<compile_context>
chip_gen: v6e
topology: v6e:2x2x1
jax: 0.10.0
libtpu: 0.0.40
codegen_flags: <defaults>
</compile_context>

<pallas_src>
import jax
import jax.numpy as jnp
from jax.experimental import pallas as pl
from jax.experimental.pallas import tpu as pltpu


def _copy_kernel(x_ref, o_ref):
    # Identity copy of one (row_block, lane) tile — the only "compute" in a
    # materialized reshape is the data movement itself.
    o_ref[...] = x_ref[...]


def _tile_budget_bytes():
    """Per-generation tile budget (and optional scoped-VMEM override).

    Double-buffered in + out tiles cost ~4x the tile:
      v5e : 3 MiB tile -> ~12 MiB (16 MiB scoped default)
      v6e : 5 MiB tile -> ~20 MiB (32 MiB scoped default)
      v7x : 8 MiB tile -> ~32 MiB (raise scoped limit to 48 MiB; 64 MiB phys)
    Unknown chips fall back to a conservative 2 MiB tile.
    """
    kind = ""
    try:
        kind = jax.devices()[0].device_kind.lower()
    except Exception:
        pass
    if "v7" in kind:
        return 8 * 1024 * 1024, 48 * 1024 * 1024
    if "v6" in kind:
        return 5 * 1024 * 1024, None
    if "v5 lite" in kind or "v5lite" in kind or "v5e" in kind:
        return 3 * 1024 * 1024, None
    return 2 * 1024 * 1024, None


def _lane_dense_view(total, pack):
    """Pick (rows, lane) with lane a multiple of 128 that divides `total`.

    Prefer the widest lane (<= 2048) that still leaves >= 2*pack rows, so the
    row axis can be split into >= 2 grid tiles (keeps both v7x TensorCores
    busy and lets in/out DMAs pipeline).  Otherwise take the widest
    128-multiple divisor found.  Returns None if total is not 128-aligned.
    """
    if total % 128 != 0:
        return None
    best = None
    lane = (min(total, 2048) // 128) * 128
    while lane >= 128:
        if total % lane == 0:
            rows = total // lane
            if best is None:
                best = (rows, lane)
            if rows >= 2 * pack:
                return rows, lane
        lane -= 128
    return best


def unflatten(x, C, H, W, N=-1, *, materialize=False, donate_input=False):
    """Pallas equivalent of Unflatten.forward: (N, C*H*W) -> (N, C, H, W).

    Default: zero-copy metadata reshape (matches torch .view exactly, no HBM
    traffic).  `materialize=True` forces an explicit copy through a Pallas
    kernel (fusion-ready materialization path).
    """
    n = x.shape[0] if N == -1 else N
    assert x.shape == (n, C * H * W), f"bad input shape {x.shape}"

    # ------------------------------------------------------------------
    # Fast path: Unflatten is a view.  Return the metadata-only reshape.
    # ------------------------------------------------------------------
    if not materialize:
        return x.reshape(n, C, H, W)

    # ------------------------------------------------------------------
    # Materialization path: tiled, pipelined HBM->VMEM->HBM copy.
    # ------------------------------------------------------------------
    total = n * C * H * W
    itemsize = jnp.dtype(x.dtype).itemsize
    # Sublane packing: 8 rows for 4-byte, 16 for 2-byte, 32 for 1-byte dtypes.
    pack = max(8, 32 // itemsize)
    target_bytes, vmem_limit = _tile_budget_bytes()

    dims = _lane_dense_view(total, pack)
    if dims is not None:
        rows, lane = dims
        view2d = x.reshape(rows, lane)          # metadata-only reshape in XLA
    else:
        # total not a multiple of 128: the last-dim block must equal the full
        # flattened feature dim (legal per the tiling rule).  Bound the block;
        # if even the minimum legal block exceeds the budget, hand back the
        # free view instead of risking a scoped-VMEM failure.
        rows, lane = n, C * H * W
        view2d = x
        min_rows = rows if rows <= pack else pack
        if min_rows * lane * itemsize > target_bytes:
            # TODO(synk): pad-and-copy path for huge non-128-aligned rows.
            return x.reshape(n, C, H, W)

    row_bytes = lane * itemsize
    if rows <= pack:
        row_block = rows                        # full first dim — always legal
    else:
        rb = (target_bytes // row_bytes // pack) * pack
        rb = max(rb, pack)
        # Guarantee >= 2 row tiles so ("parallel",) can use both v7x TCs and
        # the in/out DMAs double-buffer on every chip.
        half = (rows // 2 // pack) * pack
        if half >= pack:
            rb = min(rb, half)
        row_block = min(rb, (rows // pack) * pack)

    grid = (pl.cdiv(rows, row_block),)

    flat = pl.pallas_call(
        _copy_kernel,
        out_shape=jax.ShapeDtypeStruct((rows, lane), x.dtype),
        grid=grid,
        in_specs=[pl.BlockSpec((row_block, lane), lambda i: (i, 0))],
        out_specs=pl.BlockSpec((row_block, lane), lambda i: (i, 0)),
        compiler_params=pltpu.CompilerParams(
            # Independent row tiles: megacore split on v7x, pipelined DMAs
            # everywhere.
            dimension_semantics=("parallel",),
            vmem_limit_bytes=vmem_limit,
        ),
        # Purely memory-bound: 0 flops, read + write of the whole array.
        cost_estimate=pl.CostEstimate(
            flops=0, transcendentals=0, bytes_accessed=2 * total * itemsize),
        # Only alias when the caller can actually donate x.
        input_output_aliases=({0: 0} if donate_input else {}),
    )(view2d)

    # Metadata-only reshape (glue), matches torch's x.view(N, C, H, W).
    return flat.reshape(n, C, H, W)


if __name__ == "__main__":
    key = jax.random.PRNGKey(0)
    k1, k2, k3 = jax.random.split(key, 3)

    # 1) Module defaults (C=128, H=7, W=7) at a small batch, materialized via
    #    the Pallas copy kernel (lane-dense path: total = 12544 = 128 * 98).
    N1, C1, H1, W1 = 2, 128, 7, 7
    x1 = jax.random.normal(k1, (N1, C1 * H1 * W1), dtype=jnp.float32)
    ref1 = x1.reshape(N1, C1, H1, W1)
    out1 = jax.block_until_ready(unflatten(x1, C=C1, H=H1, W=W1, materialize=True))
    assert out1.shape == (N1, C1, H1, W1), out1.shape
    assert out1.dtype == x1.dtype
    assert bool(jnp.array_equal(out1, ref1))

    # 2) Small shape (2, 4, 16, 16), materialized (lane-dense, 2 row tiles).
    N2, C2, H2, W2 = 2, 4, 16, 16
    x2 = jax.random.normal(k2, (N2, C2 * H2 * W2), dtype=jnp.float32)
    ref2 = x2.reshape(N2, C2, H2, W2)
    out2 = jax.block_until_ready(unflatten(x2, C=C2, H=H2, W=W2, materialize=True))
    assert out2.shape == (N2, C2, H2, W2), out2.shape
    assert bool(jnp.array_equal(out2, ref2))

    # 3) Non-128-divisible case (C*H*W = 196): bounded-block fallback path.
    N3, C3, H3, W3 = 2, 4, 7, 7
    x3 = jax.random.normal(k3, (N3, C3 * H3 * W3), dtype=jnp.float32)
    ref3 = x3.reshape(N3, C3, H3, W3)
    out3 = jax.block_until_ready(unflatten(x3, C=C3, H=H3, W=W3, materialize=True))
    assert out3.shape == (N3, C3, H3, W3), out3.shape
    assert bool(jnp.array_equal(out3, ref3))

    # 4) Default (recommended) path: zero-copy view, no kernel launch.
    out4 = jax.block_until_ready(unflatten(x1, C=C1, H=H1, W=W1))
    assert out4.shape == (N1, C1, H1, W1)
    assert bool(jnp.array_equal(out4, ref1))

    print("KERNEL_OK")
</pallas_src>

<mosaic_0001>
module attributes {stable_mosaic.version = 11 : i64} {
  func.func @_copy_kernel(%arg0: i32, %arg1: memref<24x256xf32, #tpu.memory_space<vmem>>, %arg2: memref<24x256xf32, #tpu.memory_space<vmem>>) attributes {dimension_semantics = [#tpu.dimension_semantics<parallel>], iteration_bounds = array<i64: 3>, scalar_prefetch = 0 : i64, scratch_operands = 0 : i64, tpu.core_type = #tpu.core_type<tc>, window_params = [{transform_indices = @transform_0, window_bounds = array<i64: 24, 256>}, {transform_indices = @transform_1, window_bounds = array<i64: 24, 256>}]} {
    %c0 = arith.constant 0 : index
    %c0_0 = arith.constant 0 : index
    %0 = vector.load %arg1[%c0, %c0_0] : memref<24x256xf32, #tpu.memory_space<vmem>>, vector<24x256xf32>
    %c0_1 = arith.constant 0 : index
    %c0_2 = arith.constant 0 : index
    %1 = vector.load %arg2[%c0_1, %c0_2] : memref<24x256xf32, #tpu.memory_space<vmem>>, vector<24x256xf32>
    tpu.vector_store %arg2[%c0_1, %c0_2], %0 {strides = array<i32>} : memref<24x256xf32, #tpu.memory_space<vmem>>, vector<24x256xf32>,
    return
  }
  func.func @transform_0(%arg0: i32) -> (i32, i32) {
    %c0_i32 = arith.constant 0 : i32
    %c0_i32_0 = arith.constant 0 : i32
    return %arg0, %c0_i32 : i32, i32
  }
  func.func @transform_1(%arg0: i32) -> (i32, i32) {
    %c0_i32 = arith.constant 0 : i32
    %c0_i32_0 = arith.constant 0 : i32
    return %arg0, %c0_i32 : i32, i32
  }
}

</mosaic_0001>

<llo_original>
// kernel: tpu_custom_call.1
$region0: #{tpu_custom_call.1}
  #allocation0 [shape = 'u32[]', space=smem, size = 0x4, offset = 0x4, fixed_abs, tag = 'smem constant byte address 0x4 - core index']
  #allocation1 [shape = 'u32[144,128]{1,0:T(1,128)}', space=vmem, size = 0x12000, scoped, tag = 'internal scratch']
  %s0 = inlined_call_operand.hbm [shape: f32[49,256], index: 0, kind: input, shape index: {}]
  %s1 = inlined_call_operand.hbm [shape: f32[49,256], index: 1, kind: output, shape index: {}]
  %s2 = sld [smem:[#allocation0]]
  $region41: #{tpu_custom_call.1} parent=0
    _
  %s4 = ssub.s32 1, %s2
  %s5 = scalar_select 0, %s4, %s2
  $region1: #{tpu_custom_call.1} parent=0
    #allocation2 [shape = 'u8[49152]{0}', space=vmem, size = 0xc000, scoped, tag = 'input window, operand 0']
    #allocation3 [shape = 's32[2]{0}', space=sflag, size = 0x8, scoped, tag = 'scoped memory for tpu_custom_call.1']
    #allocation4 [shape = 's32[2]{0}', space=sflag, size = 0x8, scoped, tag = 'scoped memory for tpu_custom_call.1']
    #allocation5 [shape = 'u8[49152]{0}', space=vmem, size = 0xc000, scoped, tag = 'output window, operand 0']
    %6 = vsyncpa [#allocation3], 0
    %s7 = scalar_lea.sflag [#allocation3], 1
    %8 = vsyncpa %s7, 0
    %9 = vsyncpa [#allocation4], 0
    %s10 = scalar_lea.sflag [#allocation4], 1
    %11 = vsyncpa %s10, 0
    loop: start=0, step=1, limit=5
    $region2: #{tpu_custom_call.1} parent=1 // loop_pre_header
      _
    $region3: #{tpu_custom_call.1} parent=1 // loop_header
      %s13 = sphi 0, %s17
      %p14 = scmp.ge.s32.totalorder %s13, 5
      %s23 = sphi 0, %s25
      %s26 = sphi 0, %s23
      %s27 = sphi 0, %s26
      %s43 = sphi 0, %s27
      %s49 = sphi 0, %s51
      %s52 = sphi 0, %s49
      %s53 = sphi 0, %s52
      %s69 = sphi 0, %s53
    $region4: #{tpu_custom_call.1} parent=1 // loop_header_branch
      %16 = sbr.rel (%p14) target = $region8
    $region5: #{tpu_custom_call.1} parent=1 // loop_body
      %s18 = ssub.s32 %s13, 1
      %s19 = ssub.s32 %s13, 2
      %s20 = sadd.s32 %s13, 1
      %s21 = ssub.s32 %s13, %s20
      %p22 = scmp.eq.s32.totalorder %s21, 0
      %s24 = sadd.s32 %s23, 1
      %s25 = scalar_select %p22, %s23, %s24
      %p28 = pneg %p22
      %p29 = scmp.eq.s32.totalorder %s13, 2
      %p30 = por %p28, %p29
      %p31 = scmp.ne.s32.totalorder %s23, %s26
      %p32 = scmp.eq.s32.totalorder %s13, 0
      %p33 = por %p31, %p32
      %p34 = scmp.ne.s32.totalorder %s23, %s26
      %p35 = scmp.eq.s32.totalorder %s18, 2
      %p36 = por %p34, %p35
      %p37 = scmp.ne.s32.totalorder %s26, %s27
      %p38 = scmp.eq.s32.totalorder %s18, 0
      %p39 = por %p37, %p38
      %p40 = scmp.ne.s32.totalorder %s26, %s27
      %p41 = scmp.eq.s32.totalorder %s19, 2
      %p42 = por %p40, %p41
      %p44 = scmp.ne.s32.totalorder %s27, %s43
      %p45 = scmp.eq.s32.totalorder %s19, 0
      %p46 = por %p44, %p45
      %s47 = ssub.s32 %s13, %s20
      %p48 = scmp.eq.s32.totalorder %s47, 0
      %s50 = sadd.s32 %s49, 1
      %s51 = scalar_select %p48, %s49, %s50
      %p54 = pneg %p48
      %p55 = scmp.eq.s32.totalorder %s13, 2
      %p56 = por %p54, %p55
      %p57 = scmp.ne.s32.totalorder %s49, %s52
      %p58 = scmp.eq.s32.totalorder %s13, 0
      %p59 = por %p57, %p58
      %p60 = scmp.ne.s32.totalorder %s49, %s52
      %p61 = scmp.eq.s32.totalorder %s18, 2
      %p62 = por %p60, %p61
      %p63 = scmp.ne.s32.totalorder %s52, %s53
      %p64 = scmp.eq.s32.totalorder %s18, 0
      %p65 = por %p63, %p64
      %p66 = scmp.ne.s32.totalorder %s52, %s53
      %p67 = scmp.eq.s32.totalorder %s19, 2
      %p68 = por %p66, %p67
      %p70 = scmp.ne.s32.totalorder %s53, %s69
      %p71 = scmp.eq.s32.totalorder %s19, 0
      %p72 = por %p70, %p71
      %p73 = scmp.le.s32.totalorder 1, %s13
      %p74 = scmp.lt.s32.totalorder %s13, 4
      %p75 = pnand %p73, %p74
      %p76 = pneg %p75
      // Predicated region
      $region9: #{tpu_custom_call.1} parent=5 // pred_check
        _
      $region10: #{tpu_custom_call.1} parent=5 // pred_check_branch
        %78 = sbr.rel (%p75) target = $region12
      $region11: #{tpu_custom_call.1} parent=5 // pred_region
        %s79 = ssub.s32 %s13, 1
      $region12: #{tpu_custom_call.1} parent=5 // pred_fallthru
        _
      %p80 = scmp.lt.s32.totalorder %s13, 3
      // Predicated region
      $region13: #{tpu_custom_call.1} parent=5 // pred_check
        %p81 = pneg %p80
      $region14: #{tpu_custom_call.1} parent=5 // pred_check_branch
        %83 = sbr.rel (%p81) target = $region16
      $region15: #{tpu_custom_call.1} parent=5 // pred_region
        // Predicated region
        $region17: #{tpu_custom_call.1} parent=15 // pred_check
          %p84 = pneg %p33
        $region18: #{tpu_custom_call.1} parent=15 // pred_check_branch
          %86 = sbr.rel (%p84) target = $region20
        $region19: #{tpu_custom_call.1} parent=15 // pred_region
          %s87 = sand.u32 %s23, 1
          %s88 = scalar_lea.sflag [#allocation3], %s87
          %s89 = sand.u32 %s23, 1
          %s90 = smul.addr %s89, 48
          %s91 = scalar_lea.vmem [#allocation2], %s90
          %s92 = smul.u32 3, %s13
          %s93 = ssub.s32 7, %s92
          %p94 = scmp.lt.s32.totalorder %s93, 3
          %s95 = scalar_select %p94, %s93, 3
          %s96 = smul.u32 128, %s95
          %s97 = smul.u32 %s96, 2
          %s99 = ssub.s32 768, %s97
          %100 = vsyncadd %s88, %s99
          %p101 = scmp.ne.s32.totalorder 0, %s97
          %s102 = smul.addr %s92, 2
          %s103 = smul.addr %s102, 128
          %s104 = scalar_lea.hbm %s0, %s103
          %s105 = smul.u32 16, %s95
          %s106 = sshll.u32 %s91, 4
          %s107 = int_to_ptr.vmem [resolvable:$true] %s106
          %s108 = sshll.u32 %s105, 4
          %112 = dma.hbm_to_vmem [thread:$0]  (%p101), %s104, %s108, %s107, %s88, 256, 256, 16
        $region20: #{tpu_custom_call.1} parent=15 // pred_fallthru
          _
      $region16: #{tpu_custom_call.1} parent=5 // pred_fallthru
        _
      %p113 = scmp.le.s32.totalorder 1, %s13
      %p114 = scmp.lt.s32.totalorder %s13, 4
      %p115 = pnand %p113, %p114
      %p116 = pneg %p115
      // Predicated region
      $region21: #{tpu_custom_call.1} parent=5 // pred_check
        _
      $region22: #{tpu_custom_call.1} parent=5 // pred_check_branch
        %118 = sbr.rel (%p115) target = $region24
      $region23: #{tpu_custom_call.1} parent=5 // pred_region
        %s119 = ssub.s32 %s13, 1
        %s120 = sand.u32 %s26, 1
        %s121 = scalar_lea.sflag [#allocation3], %s120
        %s122 = sand.u32 %s26, 1
        %s123 = smul.addr %s122, 48
        %s124 = scalar_lea.vmem [#allocation2], %s123
        // Predicated region
        $region25: #{tpu_custom_call.1} parent=23 // pred_check
          %p125 = pneg %p39
        $region26: #{tpu_custom_call.1} parent=23 // pred_check_branch
          %127 = sbr.rel (%p125) target = $region28
        $region27: #{tpu_custom_call.1} parent=23 // pred_region
          %128 = dma.done %s121, 768
        $region28: #{tpu_custom_call.1} parent=23 // pred_fallthru
          _
        %s129 = sand.u32 %s26, 1
        %s130 = scalar_lea.sflag [#allocation3], %s129
        %s131 = sand.u32 %s26, 1
        %s132 = smul.addr %s131, 48
        %s133 = scalar_lea.vmem [#allocation2], %s132
        %p134 = pneg %p39
        %p135 = pneg %p36
        %p136 = pneg %p65
        %p137 = pneg %p62
        %s138 = sand.u32 %s52, 1
        %s139 = scalar_lea.sflag [#allocation4], %s138
        %s140 = sand.u32 %s52, 1
        %s141 = smul.addr %s140, 48
        %s142 = scalar_lea.vmem [#allocation5], %s141
        %s143 = smul.u32 3, %s18
        %s144 = ssub.s32 7, %s143
        %p145 = scmp.lt.s32.totalorder %s144, 3
        %s146 = scalar_select %p145, %s144, 3
        %s147 = smul.u32 128, %s146
        %s148 = smul.u32 %s147, 2
        %s149 = smul.u32 3, %s18
        %s150 = ssub.s32 7, %s149
        %p151 = scmp.lt.s32.totalorder %s150, 3
        %s152 = scalar_select %p151, %s150, 3
        %s153 = smul.u32 128, %s152
        %s154 = smul.u32 %s153, 2
        %v155 = vld [vmem:[%s124] sm:$0xff]
        %v156 = vld [vmem:[%s124 + $0x8] sm:$0xff]
        %v157 = vld [vmem:[%s124 + $0x10] sm:$0xff]
        %v158 = vld [vmem:[%s124 + $0x18] sm:$0xff]
        %v159 = vld [vmem:[%s124 + $0x20] sm:$0xff]
        %v160 = vld [vmem:[%s124 + $0x28] sm:$0xff]
        %161 = vst [vmem:[%s142] sm:$0xff] %v155
        %162 = vst [vmem:[%s142 + $0x8] sm:$0xff] %v156
        %163 = vst [vmem:[%s142 + $0x10] sm:$0xff] %v157
        %164 = vst [vmem:[%s142 + $0x18] sm:$0xff] %v158
        %165 = vst [vmem:[%s142 + $0x20] sm:$0xff] %v159
        %166 = vst [vmem:[%s142 + $0x28] sm:$0xff] %v160
        %s167 = sand.u32 %s52, 1
        %s168 = scalar_lea.sflag [#allocation4], %s167
        %s169 = sand.u32 %s52, 1
        %s170 = smul.addr %s169, 48
        %s171 = scalar_lea.vmem [#allocation5], %s170
        // Predicated region
        $region29: #{tpu_custom_call.1} parent=23 // pred_check
          %p172 = pneg %p62
        $region30: #{tpu_custom_call.1} parent=23 // pred_check_branch
          %174 = sbr.rel (%p172) target = $region32
        $region31: #{tpu_custom_call.1} parent=23 // pred_region
          %s175 = smul.u32 3, %s18
          %s176 = ssub.s32 7, %s175
          %p177 = scmp.lt.s32.totalorder %s176, 3
          %s178 = scalar_select %p177, %s176, 3
          %s179 = smul.u32 128, %s178
          %s180 = smul.u32 %s179, 2
          %s182 = ssub.s32 768, %s180
          %183 = vsyncadd %s168, %s182
          %p184 = scmp.ne.s32.totalorder 0, %s180
          %s185 = smul.addr %s175, 2
          %s186 = smul.addr %s185, 128
          %s187 = scalar_lea.hbm %s1, %s186
          %s188 = smul.u32 16, %s178
          %s189 = sshll.u32 %s171, 4
          %s190 = int_to_ptr.vmem [resolvable:$true] %s189
          %s191 = sshll.u32 %s188, 4
          %195 = dma.vmem_to_hbm [thread:$0]  (%p184), %s190, %s191, %s187, %s168, 256, 256, 16
        $region32: #{tpu_custom_call.1} parent=23 // pred_fallthru
          _
      $region24: #{tpu_custom_call.1} parent=5 // pred_fallthru
        _
      %p196 = scmp.le.s32.totalorder 2, %s13
      // Predicated region
      $region33: #{tpu_custom_call.1} parent=5 // pred_check
        %p197 = pneg %p196
      $region34: #{tpu_custom_call.1} parent=5 // pred_check_branch
        %199 = sbr.rel (%p197) target = $region36
      $region35: #{tpu_custom_call.1} parent=5 // pred_region
        %s200 = ssub.s32 %s13, 2
        // Predicated region
        $region37: #{tpu_custom_call.1} parent=35 // pred_check
          %p201 = pneg %p68
        $region38: #{tpu_custom_call.1} parent=35 // pred_check_branch
          %203 = sbr.rel (%p201) target = $region40
        $region39: #{tpu_custom_call.1} parent=35 // pred_region
          %s204 = sand.u32 %s53, 1
          %s205 = scalar_lea.sflag [#allocation4], %s204
          %s206 = sand.u32 %s53, 1
          %s207 = smul.addr %s206, 48
          %s208 = scalar_lea.vmem [#allocation5], %s207
          %209 = dma.done %s205, 768
        $region40: #{tpu_custom_call.1} parent=35 // pred_fallthru
          _
      $region36: #{tpu_custom_call.1} parent=5 // pred_fallthru
        _
    $region6: #{tpu_custom_call.1} parent=1 // loop_footer
      %s17 = sadd.s32 1, %s13
    $region7: #{tpu_custom_call.1} parent=1 // loop_footer_branch
      %12 = sbr.rel target = $region3
    $region8: #{tpu_custom_call.1} parent=1 // loop_exit
      _
    %210 = vsyncpa [#allocation3], 1
    %s211 = scalar_lea.sflag [#allocation3], 1
    %212 = vsyncpa %s211, 1
    %213 = vsyncpa [#allocation4], 1
    %s214 = scalar_lea.sflag [#allocation4], 1
    %215 = vsyncpa %s214, 1

</llo_original>
